<compile_context>
chip_gen: v5e
topology: v5e:2x2
jax: 0.10.0
libtpu: 0.0.40
codegen_flags: <defaults>
</compile_context>

<pallas_src>
import functools

import numpy as np
import jax
import jax.numpy as jnp
from jax import lax
from jax.experimental import pallas as pl
from jax.experimental.pallas import tpu as pltpu


def _bit_reverse_indices(n: int) -> np.ndarray:
    """Same semantics as FFTCore.bit_reverse_permutation."""
    num_bits = n.bit_length() - 1
    rev = np.zeros((n,), dtype=np.int32)
    for i in range(n):
        r, t = 0, i
        for _ in range(num_bits):
            r = (r << 1) | (t & 1)
            t >>= 1
        rev[i] = r
    return rev


@functools.lru_cache(maxsize=None)
def _roll_is_forward() -> bool:
    """True iff pltpu.roll(x, s, axis)[..., i] == x[..., (i - s) % size] (jnp.roll convention).

    Probed once with a tiny kernel so the FFT's shift bookkeeping is robust to the roll
    direction convention of the installed JAX/Mosaic version.
    """
    def probe(x_ref, o_ref):
        o_ref[...] = pltpu.roll(x_ref[...], 1, 1)

    x = jnp.tile(jnp.arange(128, dtype=jnp.int32)[None, :], (8, 1))
    y = pl.pallas_call(probe, out_shape=jax.ShapeDtypeStruct((8, 128), jnp.int32))(x)
    return int(y[0, 0]) == 127


@functools.lru_cache(maxsize=None)
def _fft_tables(n: int, inverse: bool):
    """Bit-reversal indices and per-stage, per-position twiddle table (host precomputed)."""
    stages = n.bit_length() - 1
    lanes = min(n, 128)
    rows = n // lanes

    rev = _bit_reverse_indices(n)

    sign = 1.0 if inverse else -1.0
    idx = np.arange(n)
    tw = np.empty((2 * stages, n), dtype=np.float32)
    for s in range(stages):
        h = 1 << s
        j = idx & (h - 1)                       # same twiddle for top & bottom of a pair
        ang = sign * 2.0 * np.pi * j / (2.0 * h)
        tw[2 * s] = np.cos(ang)
        tw[2 * s + 1] = np.sin(ang)
    tw = tw.reshape(2 * stages, rows, lanes)    # row-major: flat index i -> (i // lanes, i % lanes)
    return jnp.asarray(rev), jnp.asarray(tw)


def _make_fft_kernel(n: int, stages: int, rows: int, lanes: int,
                     inverse: bool, roll_forward: bool):
    inv_scale = 1.0 / n

    # Roll amounts (always non-negative) giving the neighbour `s` positions above / below.
    def _amt_from_above(s, size):   # out[i] = v[(i + s) % size]
        return (size - s) if roll_forward else s

    def _amt_from_below(s, size):   # out[i] = v[(i - s) % size]
        return s if roll_forward else (size - s)

    def kernel(tw_ref, x_ref, o_ref):
        real = x_ref[0]                                   # (rows, lanes)
        imag = x_ref[1]
        lane_id = lax.broadcasted_iota(jnp.int32, (rows, lanes), 1)
        row_id = lax.broadcasted_iota(jnp.int32, (rows, lanes), 0)

        for stage in range(stages):                       # static unroll over log2(N) stages
            h = 1 << stage                                # butterfly stride on the flat index
            wr = tw_ref[2 * stage]                        # (rows, lanes) precomputed cos
            wi = tw_ref[2 * stage + 1]                    # (rows, lanes) precomputed sin

            if h < lanes:                                 # stride lives in the lane dimension
                axis, s, size = 1, h, lanes
                is_top = (lane_id & h) == 0
            else:                                         # stride lives in the sublane (row) dim
                hr = h // lanes
                axis, s, size = 0, hr, rows
                is_top = (row_id & hr) == 0

            # Partner values via XLU rotations (wrap-around is never selected because the
            # butterfly group size divides the rotated axis length).
            above_r = pltpu.roll(real, _amt_from_above(s, size), axis)   # x[i + s]
            above_i = pltpu.roll(imag, _amt_from_above(s, size), axis)
            below_r = pltpu.roll(real, _amt_from_below(s, size), axis)   # x[i - s]
            below_i = pltpu.roll(imag, _amt_from_below(s, size), axis)

            # Bottom/top operands of each butterfly, then a single complex multiply (4 muls).
            bot_r = jnp.where(is_top, above_r, real)
            bot_i = jnp.where(is_top, above_i, imag)
            top_r = jnp.where(is_top, real, below_r)
            top_i = jnp.where(is_top, imag, below_i)

            t_r = wr * bot_r - wi * bot_i
            t_i = wi * bot_r + wr * bot_i

            real = jnp.where(is_top, top_r + t_r, top_r - t_r)
            imag = jnp.where(is_top, top_i + t_i, top_i - t_i)

        if inverse:                                       # forward path skips the (1.0) scale
            real = real * inv_scale
            imag = imag * inv_scale
        o_ref[0] = real
        o_ref[1] = imag

    return kernel


def fft_core(x, inverse: bool = False):
    """Pallas equivalent of FFTCore(num_samples=x.shape[1], inverse=inverse)(x)."""
    x = jnp.asarray(x, dtype=jnp.float32)
    assert x.ndim == 2 and x.shape[0] == 2, "expected x of shape (2, N)"
    n = int(x.shape[1])
    assert n >= 2 and (n & (n - 1)) == 0, "N must be a power of two"
    stages = n.bit_length() - 1
    lanes = min(n, 128)
    rows = n // lanes

    rev, tw = _fft_tables(n, inverse)

    # Bit-reversal gather outside the kernel, then lay the signal out as (rows, 128) so the
    # in-kernel elementwise work fills all 8 sublanes of each vreg.
    xp = jnp.take(x, rev, axis=1).reshape(2, rows, lanes)

    kernel = _make_fft_kernel(n, stages, rows, lanes, inverse, _roll_is_forward())

    out = pl.pallas_call(
        kernel,
        out_shape=jax.ShapeDtypeStruct((2, rows, lanes), jnp.float32),
        grid=(1,),
        in_specs=[
            pl.BlockSpec((2 * stages, rows, lanes), lambda i: (0, 0, 0)),
            pl.BlockSpec((2, rows, lanes), lambda i: (0, 0, 0)),
        ],
        out_specs=pl.BlockSpec((2, rows, lanes), lambda i: (0, 0, 0)),
        compiler_params=pltpu.CompilerParams(dimension_semantics=("arbitrary",)),
    )(tw, xp)

    return out.reshape(2, n)


if __name__ == "__main__":
    num_samples = 1024                                     # (2, 1024) f32 signal, 8 KiB
    key = jax.random.PRNGKey(0)
    x = jax.random.normal(key, (2, num_samples), dtype=jnp.float32)

    # Forward FFT through the Pallas kernel.
    y = jax.block_until_ready(fft_core(x, inverse=False))

    # Reference: the module computes a standard forward DFT of x[0] + i*x[1].
    xc = np.asarray(x[0]).astype(np.float64) + 1j * np.asarray(x[1]).astype(np.float64)
    ref = np.fft.fft(xc)
    np.testing.assert_allclose(np.asarray(y[0]), ref.real, rtol=5e-3, atol=5e-3)
    np.testing.assert_allclose(np.asarray(y[1]), ref.imag, rtol=5e-3, atol=5e-3)

    # Inverse FFT (inverse=True) round-trips back to the input (scaled by 1/N inside kernel).
    z = jax.block_until_ready(fft_core(y, inverse=True))
    np.testing.assert_allclose(np.asarray(z), np.asarray(x), rtol=5e-3, atol=5e-3)

    print("KERNEL_OK")
</pallas_src>

<mosaic_0001>
module attributes {stable_mosaic.version = 11 : i64} {
  func.func @probe(%arg0: memref<8x128xi32, #tpu.memory_space<vmem>>, %arg1: memref<8x128xi32, #tpu.memory_space<vmem>>) attributes {dimension_semantics = [], scalar_prefetch = 0 : i64, scratch_operands = 0 : i64, tpu.core_type = #tpu.core_type<tc>} {
    %c0 = arith.constant 0 : index
    %c0_0 = arith.constant 0 : index
    %0 = vector.load %arg0[%c0, %c0_0] : memref<8x128xi32, #tpu.memory_space<vmem>>, vector<8x128xi32>
    %c1_i32 = arith.constant 1 : i32
    %1 = tpu.dynamic_rotate %0 by %c1_i32 dim 1 : vector<8x128xi32>, i32 -> vector<8x128xi32>
    %c0_1 = arith.constant 0 : index
    %c0_2 = arith.constant 0 : index
    %2 = vector.load %arg1[%c0_1, %c0_2] : memref<8x128xi32, #tpu.memory_space<vmem>>, vector<8x128xi32>
    tpu.vector_store %arg1[%c0_1, %c0_2], %1 {strides = array<i32>} : memref<8x128xi32, #tpu.memory_space<vmem>>, vector<8x128xi32>,
    return
  }
}

</mosaic_0001>

<llo_original>
// kernel: tpu_custom_call.1
$region0: #{tpu_custom_call.1}
  #allocation0 [shape = 'u32[]', space=smem, size = 0x4, offset = 0x4, fixed_abs, tag = 'smem constant byte address 0x4 - core index']
  #allocation1 [shape = 'u32[72,128]{1,0:T(1,128)}', space=vmem, size = 0x9000, scoped, tag = 'internal scratch']
  %s0 = inlined_call_operand.hbm [shape: s32[8,128], index: 0, kind: input, shape index: {}]
  %s1 = inlined_call_operand.hbm [shape: s32[8,128], index: 1, kind: output, shape index: {}]
  %s2 = sld [smem:[#allocation0]]
  $region18: #{tpu_custom_call.1} parent=0
    _
  %s4 = ssub.s32 1, %s2
  %s5 = scalar_select 0, %s4, %s2
  $region1: #{tpu_custom_call.1} parent=0
    #allocation2 [shape = 'u8[4096]{0}', space=vmem, size = 0x1000, scoped, tag = 'input window, operand 0, single buffered']
    #allocation3 [shape = 's32[1]{0}', space=sflag, size = 0x4, scoped, tag = 'scoped memory for tpu_custom_call.1']
    #allocation4 [shape = 's32[1]{0}', space=sflag, size = 0x4, scoped, tag = 'scoped memory for tpu_custom_call.1']
    #allocation5 [shape = 'u8[4096]{0}', space=vmem, size = 0x1000, scoped, tag = 'output window, operand 0, single buffered']
    %6 = vsyncpa [#allocation3], 0
    %7 = vsyncpa [#allocation4], 0
    // Predicated region
    $region2: #{tpu_custom_call.1} parent=1 // pred_check
      _
    $region3: #{tpu_custom_call.1} parent=1 // pred_check_branch
      %9 = sbr.rel (0) target = $region5
    $region4: #{tpu_custom_call.1} parent=1 // pred_region
      %11 = vsyncadd [#allocation3], 0
      %s13 = sshll.u32 %s0, 4
      %s14 = int_to_ptr.hbm [resolvable:$true] %s13
      %s15 = sshll.u32 [#allocation2], 4
      %s16 = int_to_ptr.vmem [resolvable:$true] %s15
      %18 = dma.hbm_to_vmem [thread:$0]  %s14, 128, %s16, [#allocation3]
    $region5: #{tpu_custom_call.1} parent=1 // pred_fallthru
      _
    // Predicated region
    $region6: #{tpu_custom_call.1} parent=1 // pred_check
      _
    $region7: #{tpu_custom_call.1} parent=1 // pred_check_branch
      %20 = sbr.rel (0) target = $region9
    $region8: #{tpu_custom_call.1} parent=1 // pred_region
      %22 = dma.done [#allocation3], 128
    $region9: #{tpu_custom_call.1} parent=1 // pred_fallthru
      _
    %v23 = vld [vmem:[#allocation2] sm:$0xff]
    %24 = vrot.lane.b32.xlu0 %v23, 1
    %v25 = vpop.permute.xlu0 %24
    %26 = vst [vmem:[#allocation5] sm:$0xff] %v25
    // Predicated region
    $region10: #{tpu_custom_call.1} parent=1 // pred_check
      _
    $region11: #{tpu_custom_call.1} parent=1 // pred_check_branch
      %28 = sbr.rel (0) target = $region13
    $region12: #{tpu_custom_call.1} parent=1 // pred_region
      %30 = vsyncadd [#allocation4], 0
      %s32 = sshll.u32 [#allocation5], 4
      %s33 = int_to_ptr.vmem [resolvable:$true] %s32
      %s34 = sshll.u32 %s1, 4
      %s35 = int_to_ptr.hbm [resolvable:$true] %s34
      %37 = dma.vmem_to_hbm [thread:$0]  %s33, 128, %s35, [#allocation4]
    $region13: #{tpu_custom_call.1} parent=1 // pred_fallthru
      _
    // Predicated region
    $region14: #{tpu_custom_call.1} parent=1 // pred_check
      _
    $region15: #{tpu_custom_call.1} parent=1 // pred_check_branch
      %39 = sbr.rel (0) target = $region17
    $region16: #{tpu_custom_call.1} parent=1 // pred_region
      %41 = dma.done [#allocation4], 128
    $region17: #{tpu_custom_call.1} parent=1 // pred_fallthru
      _
    %42 = vsyncpa [#allocation3], 1
    %43 = vsyncpa [#allocation4], 1

</llo_original>
